<compile_context>
chip_gen: v7x
topology: tpu7x:2x2x1
jax: 0.10.0
libtpu: 0.0.40
codegen_flags: <defaults>
</compile_context>

<pallas_src>
import functools

import jax
import jax.numpy as jnp
from jax.experimental import pallas as pl
from jax.experimental.pallas import tpu as pltpu

IN_DIM = 1280  # fixed by the module (fc1 = nn.Linear(1280, hidden_dim))


def _round_up(x, m):
    return (x + m - 1) // m * m


def _cdiv(a, b):
    return -(-a // b)


@functools.lru_cache(maxsize=1)
def _vmem_budgets():
    """Per-generation VMEM budgets (bytes) + whether the batch axis must be
    splittable across 2 TensorCores (v7x-like parts)."""
    vmem_bytes = None
    try:
        info = pltpu.get_tpu_info()
        vmem_bytes = getattr(info, "vmem_capacity_bytes", None)
    except Exception:
        vmem_bytes = None
    if vmem_bytes is None:
        vmem_bytes = 64 * 1024 * 1024  # conservative fallback (v7x-sized)

    if vmem_bytes >= 100 * 1024 * 1024:
        # v5e / v6e: 128 MiB physical VMEM, single TensorCore per chip.
        return {"weight_budget": 80 << 20, "vmem_cap": 100 << 20, "split_cores": False}
    # v7x-like: 64 MiB VMEM per TensorCore, 2 TensorCores per chip.
    return {"weight_budget": 24 << 20, "vmem_cap": 48 << 20, "split_cores": True}


def _mlp_kernel(x_ref, w1_ref, b1_ref, w2_ref, b2_ref, o_ref, acc_ref):
    """grid = (batch_tiles, hidden_tiles); hidden axis is the reduction axis."""
    k = pl.program_id(1)

    @pl.when(k == 0)
    def _init():
        acc_ref[...] = jnp.zeros_like(acc_ref)

    # fc1 tile: (block_m, IN_DIM) @ (IN_DIM, tile_h) with f32 accumulation.
    h = jnp.dot(x_ref[...], w1_ref[...], preferred_element_type=jnp.float32)
    # bias + ReLU in f32 on the VPU (b1 tile is (1, tile_h) -> broadcasts).
    h = jnp.maximum(h + b1_ref[...], 0.0)
    # fc2 partial product for this hidden tile, accumulated in f32 scratch.
    # Intentional cast: compute-dtype MXU inputs, f32 accumulate.
    acc_ref[...] += jnp.dot(h.astype(w2_ref.dtype), w2_ref[...],
                            preferred_element_type=jnp.float32)

    @pl.when(k == pl.num_programs(1) - 1)
    def _finalize():
        o_ref[...] = (acc_ref[...] + b2_ref[...]).astype(o_ref.dtype)


def prepare_padded_params(w1, b1, w2, b2, *, compute_dtype=jnp.bfloat16,
                          max_tile_h=8192):
    """Pad + cast parameters once (lane-dense, multiples of 128) and pick the
    hidden-dim tiling. Reuse the result across forward calls for inference."""
    assert w1.shape[0] == IN_DIM
    H = w1.shape[1]
    O = w2.shape[1]
    compute_dtype = jnp.dtype(compute_dtype)
    itemsize = compute_dtype.itemsize
    budgets = _vmem_budgets()

    H_pad0 = _round_up(H, 128)
    O_pad = _round_up(O, 128)

    # Largest hidden tile whose double-buffered W1+W2 tiles fit the weight budget.
    per_h_bytes = 2 * (IN_DIM + O_pad) * itemsize
    tile_cap = max(128, (budgets["weight_budget"] // per_h_bytes) // 128 * 128)
    tile_cap = min(tile_cap, _round_up(min(max_tile_h, H_pad0), 128))

    # Near-divisor tile: split H_pad0 as evenly as possible instead of rounding
    # H up to a multiple of tile_cap (avoids up to tile_cap-128 of pure padding).
    num_k = _cdiv(H_pad0, tile_cap)
    tile_h = _round_up(_cdiv(H_pad0, num_k), 128)
    H_pad = tile_h * num_k

    w1p = jnp.zeros((IN_DIM, H_pad), compute_dtype).at[:, :H].set(w1.astype(compute_dtype))
    w2p = jnp.zeros((H_pad, O_pad), compute_dtype).at[:H, :O].set(w2.astype(compute_dtype))
    b1p = jnp.zeros((1, H_pad), jnp.float32).at[0, :H].set(b1.astype(jnp.float32))
    b2p = jnp.zeros((1, O_pad), jnp.float32).at[0, :O].set(b2.astype(jnp.float32))

    return {"w1p": w1p, "b1p": b1p, "w2p": w2p, "b2p": b2p,
            "H": H, "O": O, "H_pad": H_pad, "O_pad": O_pad,
            "tile_h": tile_h, "num_k": num_k, "compute_dtype": compute_dtype}


def vanilla_net_forward_prepared(x, params, *, block_m=None, out_dtype=None):
    """x: (B, 1280); params: output of prepare_padded_params."""
    B, D = x.shape
    assert D == IN_DIM
    compute_dtype = params["compute_dtype"]
    itemsize = compute_dtype.itemsize
    out_dtype = jnp.dtype(out_dtype or x.dtype)
    out_itemsize = out_dtype.itemsize

    O = params["O"]
    O_pad = params["O_pad"]
    H_pad = params["H_pad"]
    tile_h = params["tile_h"]
    num_k = params["num_k"]
    w1p, b1p, w2p, b2p = params["w1p"], params["b1p"], params["w2p"], params["b2p"]
    budgets = _vmem_budgets()

    # ---- batch tile selection ------------------------------------------------
    gran = 16 if itemsize < 4 else 8          # bf16 packs 16 rows per vreg tile
    if block_m is None:
        block_m = min(1024, _round_up(B, gran))
        # Keep the double-buffered x/out tiles + f32 accumulator within what
        # the (double-buffered) weight tiles leave free in the scoped budget.
        weight_tile_bytes = 2 * (IN_DIM + O_pad) * tile_h * itemsize
        slack = 2 << 20
        avail = max(0, budgets["vmem_cap"] - weight_tile_bytes - slack)
        per_row = 2 * IN_DIM * itemsize + 2 * O_pad * out_itemsize + 4 * O_pad
        max_rows = max(gran, (avail // per_row) // gran * gran)
        block_m = max(gran, min(block_m, max_rows))
        if budgets["split_cores"]:
            # 2 TensorCores share the "parallel" batch axis -> need >= 2 tiles.
            block_m = min(block_m, max(gran, _round_up(_cdiv(B, 2), gran)))
    num_m = _cdiv(B, block_m)
    B_pad = num_m * block_m

    # Only x is padded per call (weights were padded once in prepare_*).
    xp = x.astype(compute_dtype)
    if B_pad != B:
        xp = jnp.zeros((B_pad, IN_DIM), compute_dtype).at[:B].set(xp)

    # ---- VMEM budget + cost estimate ----------------------------------------
    vmem_need = (2 * itemsize * (block_m * IN_DIM + IN_DIM * tile_h + tile_h * O_pad)
                 + 2 * 4 * (tile_h + O_pad)
                 + 2 * out_itemsize * block_m * O_pad
                 + 4 * block_m * O_pad)
    vmem_limit = int(min(budgets["vmem_cap"], max(32 << 20, 2 * vmem_need)))

    # Weights are re-streamed once per batch tile only when num_k > 1; with
    # num_k == 1 their block index is constant and they stay VMEM-resident.
    weight_passes = num_m if num_k > 1 else 1
    flops = 2 * B_pad * (IN_DIM * H_pad + H_pad * O_pad)
    bytes_accessed = (xp.size * itemsize
                      + weight_passes * (w1p.size + w2p.size) * itemsize
                      + weight_passes * (b1p.size + b2p.size) * 4
                      + B_pad * O_pad * out_itemsize)
    cost = pl.CostEstimate(flops=int(flops), transcendentals=0,
                           bytes_accessed=int(bytes_accessed))

    out_padded = pl.pallas_call(
        _mlp_kernel,
        out_shape=jax.ShapeDtypeStruct((B_pad, O_pad), out_dtype),
        grid_spec=pltpu.PrefetchScalarGridSpec(
            num_scalar_prefetch=0,
            grid=(num_m, num_k),
            in_specs=[
                pl.BlockSpec((block_m, IN_DIM), lambda i, k: (i, 0)),  # x tile
                pl.BlockSpec((IN_DIM, tile_h), lambda i, k: (0, k)),   # W1 tile
                pl.BlockSpec((1, tile_h), lambda i, k: (0, k)),        # b1 tile
                pl.BlockSpec((tile_h, O_pad), lambda i, k: (k, 0)),    # W2 tile
                pl.BlockSpec((1, O_pad), lambda i, k: (0, 0)),         # b2
            ],
            out_specs=pl.BlockSpec((block_m, O_pad), lambda i, k: (i, 0)),
            scratch_shapes=[pltpu.VMEM((block_m, O_pad), jnp.float32)],
        ),
        compiler_params=pltpu.CompilerParams(
            dimension_semantics=("parallel", "arbitrary"),
            vmem_limit_bytes=vmem_limit),
        cost_estimate=cost,
    )(xp, w1p, b1p, w2p, b2p)

    return out_padded[:B, :O]


def vanilla_net_forward(x, w1, b1, w2, b2, *, compute_dtype=jnp.bfloat16,
                        block_m=None, max_tile_h=8192, out_dtype=None):
    """Convenience one-shot wrapper. For repeated inference, call
    prepare_padded_params() once and reuse it with vanilla_net_forward_prepared."""
    params = prepare_padded_params(w1, b1, w2, b2, compute_dtype=compute_dtype,
                                   max_tile_h=max_tile_h)
    return vanilla_net_forward_prepared(x, params, block_m=block_m,
                                        out_dtype=out_dtype)


def init_params(key, hidden_dim, out_dim, dtype=jnp.float32):
    # Deterministic init mimicking PyTorch Linear's U(-1/sqrt(fan_in), 1/sqrt(fan_in)).
    k1, k2, k3, k4 = jax.random.split(key, 4)
    bound1 = 1.0 / (IN_DIM ** 0.5)
    bound2 = 1.0 / (hidden_dim ** 0.5)
    w1 = jax.random.uniform(k1, (IN_DIM, hidden_dim), dtype, -bound1, bound1)
    b1 = jax.random.uniform(k2, (hidden_dim,), dtype, -bound1, bound1)
    w2 = jax.random.uniform(k3, (hidden_dim, out_dim), dtype, -bound2, bound2)
    b2 = jax.random.uniform(k4, (out_dim,), dtype, -bound2, bound2)
    return w1, b1, w2, b2


if __name__ == "__main__":
    key = jax.random.PRNGKey(0)
    kx, kp = jax.random.split(key)

    batch = 8
    hidden_dim = 32
    out_dim = 8
    dtype = jnp.float32

    x = jax.random.normal(kx, (batch, IN_DIM), dtype)
    w1, b1, w2, b2 = init_params(kp, hidden_dim, out_dim, dtype)
    ref = jnp.maximum(x @ w1 + b1, 0.0) @ w2 + b2

    # 1) f32 compute path, weights padded once and reused (inference pattern):
    #    exact-semantics check against the PyTorch math.
    params_f32 = prepare_padded_params(w1, b1, w2, b2, compute_dtype=jnp.float32)
    out_f32 = jax.block_until_ready(vanilla_net_forward_prepared(x, params_f32))
    assert out_f32.shape == (batch, out_dim)
    assert jnp.allclose(out_f32, ref, atol=1e-5, rtol=1e-5)

    # 2) default bf16 fast path (f32 accumulation): bf16-level tolerance.
    out_bf16 = jax.block_until_ready(vanilla_net_forward(x, w1, b1, w2, b2))
    assert out_bf16.shape == (batch, out_dim)
    assert jnp.allclose(out_bf16, ref, atol=5e-2, rtol=5e-2)

    # 3) exercise the hidden-dim (reduction) tiling + accumulator path.
    hidden2 = 256
    w1b, b1b, w2b, b2b = init_params(jax.random.PRNGKey(1), hidden2, out_dim, dtype)
    ref2 = jnp.maximum(x @ w1b + b1b, 0.0) @ w2b + b2b
    out2 = jax.block_until_ready(
        vanilla_net_forward(x, w1b, b1b, w2b, b2b,
                            compute_dtype=jnp.float32, max_tile_h=128))
    assert out2.shape == (batch, out_dim)
    assert jnp.allclose(out2, ref2, atol=1e-4, rtol=1e-4)

    print("KERNEL_OK")
</pallas_src>

<mosaic_0001>
module attributes {stable_mosaic.version = 11 : i64} {
  func.func @_mlp_kernel(%arg0: i32, %arg1: i32, %arg2: memref<8x1280xf32, #tpu.memory_space<vmem>>, %arg3: memref<1280x128xf32, #tpu.memory_space<vmem>>, %arg4: memref<1x128xf32, #tpu.memory_space<vmem>>, %arg5: memref<128x128xf32, #tpu.memory_space<vmem>>, %arg6: memref<1x128xf32, #tpu.memory_space<vmem>>, %arg7: memref<8x128xf32, #tpu.memory_space<vmem>>, %arg8: memref<8x128xf32, #tpu.memory_space<vmem>>) attributes {dimension_semantics = [#tpu.dimension_semantics<parallel>, #tpu.dimension_semantics<arbitrary>], iteration_bounds = array<i64: 1, 1>, scalar_prefetch = 0 : i64, scratch_operands = 1 : i64, tpu.core_type = #tpu.core_type<tc>, window_params = [{transform_indices = @transform_0, window_bounds = array<i64: 8, 1280>}, {transform_indices = @transform_1, window_bounds = array<i64: 1280, 128>}, {transform_indices = @transform_2, window_bounds = array<i64: 1, 128>}, {transform_indices = @transform_3, window_bounds = array<i64: 128, 128>}, {pipeline_mode = #tpu.pipeline_mode<synchronous>, transform_indices = @transform_4, window_bounds = array<i64: 1, 128>}, {transform_indices = @transform_5, window_bounds = array<i64: 8, 128>}]} {
    %c0_i32 = arith.constant 0 : i32
    %0 = arith.cmpi eq, %arg1, %c0_i32 : i32
    %1 = arith.extui %0 : i1 to i32
    %c0_i32_0 = arith.constant 0 : i32
    %2 = arith.cmpi ne, %1, %c0_i32_0 : i32
    scf.if %2 {
      %cst_16 = arith.constant 0.000000e+00 : f32
      %19 = vector.broadcast %cst_16 : f32 to vector<8x128xf32>
      %c0_17 = arith.constant 0 : index
      %c0_18 = arith.constant 0 : index
      %20 = vector.load %arg8[%c0_17, %c0_18] : memref<8x128xf32, #tpu.memory_space<vmem>>, vector<8x128xf32>
      tpu.vector_store %arg8[%c0_17, %c0_18], %19 {strides = array<i32>} : memref<8x128xf32, #tpu.memory_space<vmem>>, vector<8x128xf32>,
    } else {
    }
    %c0 = arith.constant 0 : index
    %c0_1 = arith.constant 0 : index
    %3 = vector.load %arg2[%c0, %c0_1] : memref<8x1280xf32, #tpu.memory_space<vmem>>, vector<8x1280xf32>
    %c0_2 = arith.constant 0 : index
    %c0_3 = arith.constant 0 : index
    %4 = vector.load %arg3[%c0_2, %c0_3] : memref<1280x128xf32, #tpu.memory_space<vmem>>, vector<1280x128xf32>
    %cst = arith.constant dense<0.000000e+00> : vector<8x128xf32>
    %5 = tpu.matmul %3, %4, %cst {dimension_numbers = #tpu.dot_dimension_numbers<[1], [0], [0], [1], [0, 0, 1, 1], [], []>} : vector<8x1280xf32>, vector<1280x128xf32>, vector<8x128xf32> -> vector<8x128xf32>
    %c0_4 = arith.constant 0 : index
    %c0_5 = arith.constant 0 : index
    %6 = vector.load %arg4[%c0_4, %c0_5] : memref<1x128xf32, #tpu.memory_space<vmem>>, vector<1x128xf32>
    %7 = vector.broadcast %6 : vector<1x128xf32> to vector<8x128xf32>
    %8 = arith.addf %5, %7 : vector<8x128xf32>
    %cst_6 = arith.constant 0.000000e+00 : f32
    %9 = vector.broadcast %cst_6 : f32 to vector<8x128xf32>
    %10 = arith.maximumf %8, %9 : vector<8x128xf32>
    %c0_7 = arith.constant 0 : index
    %c0_8 = arith.constant 0 : index
    %11 = vector.load %arg8[%c0_7, %c0_8] : memref<8x128xf32, #tpu.memory_space<vmem>>, vector<8x128xf32>
    %c0_9 = arith.constant 0 : index
    %c0_10 = arith.constant 0 : index
    %12 = vector.load %arg5[%c0_9, %c0_10] : memref<128x128xf32, #tpu.memory_space<vmem>>, vector<128x128xf32>
    %cst_11 = arith.constant dense<0.000000e+00> : vector<8x128xf32>
    %13 = tpu.matmul %10, %12, %cst_11 {dimension_numbers = #tpu.dot_dimension_numbers<[1], [0], [0], [1], [0, 0, 1, 1], [], []>} : vector<8x128xf32>, vector<128x128xf32>, vector<8x128xf32> -> vector<8x128xf32>
    %14 = arith.addf %11, %13 : vector<8x128xf32>
    %c0_12 = arith.constant 0 : index
    %c0_13 = arith.constant 0 : index
    %15 = vector.load %arg8[%c0_12, %c0_13] : memref<8x128xf32, #tpu.memory_space<vmem>>, vector<8x128xf32>
    tpu.vector_store %arg8[%c0_12, %c0_13], %14 {strides = array<i32>} : memref<8x128xf32, #tpu.memory_space<vmem>>, vector<8x128xf32>,
    %c0_i32_14 = arith.constant 0 : i32
    %16 = arith.cmpi eq, %arg1, %c0_i32_14 : i32
    %17 = arith.extui %16 : i1 to i32
    %c0_i32_15 = arith.constant 0 : i32
    %18 = arith.cmpi ne, %17, %c0_i32_15 : i32
    scf.if %18 {
      %c0_16 = arith.constant 0 : index
      %c0_17 = arith.constant 0 : index
      %19 = vector.load %arg8[%c0_16, %c0_17] : memref<8x128xf32, #tpu.memory_space<vmem>>, vector<8x128xf32>
      %c0_18 = arith.constant 0 : index
      %c0_19 = arith.constant 0 : index
      %20 = vector.load %arg6[%c0_18, %c0_19] : memref<1x128xf32, #tpu.memory_space<vmem>>, vector<1x128xf32>
      %21 = vector.broadcast %20 : vector<1x128xf32> to vector<8x128xf32>
      %22 = arith.addf %19, %21 : vector<8x128xf32>
      %c0_20 = arith.constant 0 : index
      %c0_21 = arith.constant 0 : index
      %23 = vector.load %arg7[%c0_20, %c0_21] : memref<8x128xf32, #tpu.memory_space<vmem>>, vector<8x128xf32>
      tpu.vector_store %arg7[%c0_20, %c0_21], %22 {strides = array<i32>} : memref<8x128xf32, #tpu.memory_space<vmem>>, vector<8x128xf32>,
    } else {
    }
    return
  }
  func.func @transform_0(%arg0: i32, %arg1: i32) -> (i32, i32) {
    %c0_i32 = arith.constant 0 : i32
    %c0_i32_0 = arith.constant 0 : i32
    return %arg0, %c0_i32 : i32, i32
  }
  func.func @transform_1(%arg0: i32, %arg1: i32) -> (i32, i32) {
    %c0_i32 = arith.constant 0 : i32
    %c0_i32_0 = arith.constant 0 : i32
    return %c0_i32, %arg1 : i32, i32
  }
  func.func @transform_2(%arg0: i32, %arg1: i32) -> (i32, i32) {
    %c0_i32 = arith.constant 0 : i32
    %c0_i32_0 = arith.constant 0 : i32
    return %c0_i32, %arg1 : i32, i32
  }
  func.func @transform_3(%arg0: i32, %arg1: i32) -> (i32, i32) {
    %c0_i32 = arith.constant 0 : i32
    %c0_i32_0 = arith.constant 0 : i32
    return %arg1, %c0_i32 : i32, i32
  }
  func.func @transform_4(%arg0: i32, %arg1: i32) -> (i32, i32) {
    %c0_i32 = arith.constant 0 : i32
    %c0_i32_0 = arith.constant 0 : i32
    %c0_i32_1 = arith.constant 0 : i32
    return %c0_i32, %c0_i32_0 : i32, i32
  }
  func.func @transform_5(%arg0: i32, %arg1: i32) -> (i32, i32) {
    %c0_i32 = arith.constant 0 : i32
    %c0_i32_0 = arith.constant 0 : i32
    return %arg0, %c0_i32 : i32, i32
  }
}

</mosaic_0001>

<llo_original>
// kernel: tpu_custom_call.1
$region0: #{tpu_custom_call.1}
  #allocation0 [shape = 'u32[]', space=smem, size = 0x4, offset = 0x4, fixed_abs, tag = 'smem constant byte address 0x4 - core index']
  #allocation1 [shape = 'u32[144,128]{1,0:T(1,128)}', space=vmem, size = 0x12000, scoped, tag = 'internal scratch']
  #allocation2 [shape = 'f32[8,128]{1,0:T(8,128)}', space=vmem, size = 0x1000, scoped, tag = 'scratch operand']
  %s0 = inlined_call_operand.hbm [shape: f32[8,1280], index: 0, kind: input, shape index: {}]
  %s1 = inlined_call_operand.hbm [shape: f32[1280,128], index: 1, kind: input, shape index: {}]
  %s2 = inlined_call_operand.vmem [shape: f32[1,128], index: 2, kind: input, shape index: {}]
  %s3 = inlined_call_operand.hbm [shape: f32[128,128], index: 3, kind: input, shape index: {}]
  %s4 = inlined_call_operand.vmem [shape: f32[1,128], index: 4, kind: input, shape index: {}]
  %s5 = inlined_call_operand.hbm [shape: f32[8,128], index: 5, kind: output, shape index: {}]
  %s6 = sld [smem:[#allocation0]]
  $region50: #{tpu_custom_call.1} parent=0
    _
  %s8 = ssub.s32 1, %s6
  %s9 = scalar_select 0, %s8, %s6
  $region1: #{tpu_custom_call.1} parent=0
    #allocation3 [shape = 'u8[40960]{0}', space=vmem, size = 0xa000, scoped, tag = 'input window, operand 0, single buffered']
    #allocation4 [shape = 's32[1]{0}', space=sflag, size = 0x4, scoped, tag = 'scoped memory for tpu_custom_call.1']
    #allocation5 [shape = 's32[1]{0}', space=sflag, size = 0x4, scoped, tag = 'scoped memory for tpu_custom_call.1']
    #allocation6 [shape = 'u8[655360]{0}', space=vmem, size = 0xa0000, scoped, tag = 'input window, operand 1, single buffered']
    #allocation7 [shape = 's32[1]{0}', space=sflag, size = 0x4, scoped, tag = 'scoped memory for tpu_custom_call.1']
    #allocation8 [shape = 'u8[65536]{0}', space=vmem, size = 0x10000, scoped, tag = 'input window, operand 3, single buffered']
    #allocation9 [shape = 'u8[4096]{0}', space=vmem, size = 0x1000, scoped, tag = 'output window, operand 0, single buffered']
    %10 = vsyncpa [#allocation4], 0
    %11 = vsyncpa [#allocation7], 0
    %12 = vsyncpa [#allocation5], 0
    // Predicated region
    $region2: #{tpu_custom_call.1} parent=1 // pred_check
      _
    $region3: #{tpu_custom_call.1} parent=1 // pred_check_branch
      %14 = sbr.rel (0) target = $region5
    $region4: #{tpu_custom_call.1} parent=1 // pred_region
      %s16 = ssub.s32 1280, 1280
      %17 = vsyncadd [#allocation4], %s16
      %s19 = sshll.u32 [#allocation3], 4
      %s20 = int_to_ptr.vmem [resolvable:$true] %s19
      %22 = dma.hbm_to_vmem [thread:$0]  %s0, 1280, %s20, [#allocation4]
    $region5: #{tpu_custom_call.1} parent=1 // pred_fallthru
      _
    // Predicated region
    $region6: #{tpu_custom_call.1} parent=1 // pred_check
      _
    $region7: #{tpu_custom_call.1} parent=1 // pred_check_branch
      %24 = sbr.rel (0) target = $region9
    $region8: #{tpu_custom_call.1} parent=1 // pred_region
      %s26 = ssub.s32 20480, 20480
      %27 = vsyncadd [#allocation7], %s26
      %s28 = sshll.u32 [#allocation6], 4
      %s29 = int_to_ptr.vmem [resolvable:$true] %s28
      %34 = dma.hbm_to_vmem [thread:$0]  %s1, 20480, %s29, [#allocation7], 128, 128, 8
    $region9: #{tpu_custom_call.1} parent=1 // pred_fallthru
      _
    // Predicated region
    $region10: #{tpu_custom_call.1} parent=1 // pred_check
      _
    $region11: #{tpu_custom_call.1} parent=1 // pred_check_branch
      %36 = sbr.rel (0) target = $region13
    $region12: #{tpu_custom_call.1} parent=1 // pred_region
      _
    $region13: #{tpu_custom_call.1} parent=1 // pred_fallthru
      _
    // Predicated region
    $region14: #{tpu_custom_call.1} parent=1 // pred_check
      _
    $region15: #{tpu_custom_call.1} parent=1 // pred_check_branch
      %38 = sbr.rel (0) target = $region17
    $region16: #{tpu_custom_call.1} parent=1 // pred_region
      %s40 = ssub.s32 2048, 2048
      %41 = vsyncadd [#allocation7], %s40
      %s42 = sshll.u32 [#allocation8], 4
      %s43 = int_to_ptr.vmem [resolvable:$true] %s42
      %48 = dma.hbm_to_vmem [thread:$0]  %s3, 2048, %s43, [#allocation7], 128, 128, 8
    $region17: #{tpu_custom_call.1} parent=1 // pred_fallthru
      _
    // Predicated region
    $region18: #{tpu_custom_call.1} parent=1 // pred_check
      _
    $region19: #{tpu_custom_call.1} parent=1 // pred_check_branch
      %50 = sbr.rel (0) target = $region21
    $region20: #{tpu_custom_call.1} parent=1 // pred_region
      _
    $region21: #{tpu_custom_call.1} parent=1 // pred_fallthru
      _
    // Predicated region
    $region22: #{tpu_custom_call.1} parent=1 // pred_check
      _
    $region23: #{tpu_custom_call.1} parent=1 // pred_check_branch
      %52 = sbr.rel (0) target = $region25
    $region24: #{tpu_custom_call.1} parent=1 // pred_region
      %53 = dma.done [#allocation4], 1280
    $region25: #{tpu_custom_call.1} parent=1 // pred_fallthru
      _
    // Predicated region
    $region26: #{tpu_custom_call.1} parent=1 // pred_check
      _
    $region27: #{tpu_custom_call.1} parent=1 // pred_check_branch
      %55 = sbr.rel (0) target = $region29
    $region28: #{tpu_custom_call.1} parent=1 // pred_region
      %56 = dma.done [#allocation7], 20480
    $region29: #{tpu_custom_call.1} parent=1 // pred_fallthru
      _
    // Predicated region
    $region30: #{tpu_custom_call.1} parent=1 // pred_check
      _
    $region31: #{tpu_custom_call.1} parent=1 // pred_check_branch
      %58 = sbr.rel (0) target = $region33
    $region32: #{tpu_custom_call.1} parent=1 // pred_region
      %59 = dma.done [#allocation7], 2048
    $region33: #{tpu_custom_call.1} parent=1 // pred_fallthru
      _
    %p60 = scmp.eq.s32.totalorder 0, 0
    // Predicated region
    $region34: #{tpu_custom_call.1} parent=1 // pred_check
      %p61 = pneg %p60
    $region35: #{tpu_custom_call.1} parent=1 // pred_check_branch
      %63 = sbr.rel (%p61) target = $region37
    $region36: #{tpu_custom_call.1} parent=1 // pred_region
      %64 = vst [vmem:[#allocation2] sm:$0xff] 0.0
    $region37: #{tpu_custom_call.1} parent=1 // pred_fallthru
      _
    %v65 = vld [vmem:[#allocation3] sm:$0xff]
    %v66 = vld [vmem:[#allocation3 + $0x8] sm:$0xff]
    %v67 = vld [vmem:[#allocation3 + $0x10] sm:$0xff]
    %v68 = vld [vmem:[#allocation3 + $0x18] sm:$0xff]
    %v69 = vld [vmem:[#allocation3 + $0x20] sm:$0xff]
    %v70 = vld [vmem:[#allocation3 + $0x28] sm:$0xff]
    %v71 = vld [vmem:[#allocation3 + $0x30] sm:$0xff]
    %v72 = vld [vmem:[#allocation3 + $0x38] sm:$0xff]
    %v73 = vld [vmem:[#allocation3 + $0x40] sm:$0xff]
    %v74 = vld [vmem:[#allocation3 + $0x48] sm:$0xff]
    %v75 = vld [vmem:[#allocation6] sm:$0xff]
    %v76 = vld [vmem:[#allocation6 + $0x8] sm:$0xff]
    %v77 = vld [vmem:[#allocation6 + $0x10] sm:$0xff]
    %v78 = vld [vmem:[#allocation6 + $0x18] sm:$0xff]
    %v79 = vld [vmem:[#allocation6 + $0x20] sm:$0xff]
    %v80 = vld [vmem:[#allocation6 + $0x28] sm:$0xff]
    %v81 = vld [vmem:[#allocation6 + $0x30] sm:$0xff]
    %v82 = vld [vmem:[#allocation6 + $0x38] sm:$0xff]
    %v83 = vld [vmem:[#allocation6 + $0x40] sm:$0xff]
    %v84 = vld [vmem:[#allocation6 + $0x48] sm:$0xff]
    %v85 = vld [vmem:[#allocation6 + $0x50] sm:$0xff]
    %v86 = vld [vmem:[#allocation6 + $0x58] sm:$0xff]
    %v87 = vld [vmem:[#allocation6 + $0x60] sm:$0xff]
    %v88 = vld [vmem:[#allocation6 + $0x68] sm:$0xff]
    %v89 = vld [vmem:[#allocation6 + $0x70] sm:$0xff]
    %v90 = vld [vmem:[#allocation6 + $0x78] sm:$0xff]
    %v91 = vld [vmem:[#allocation6 + $0x80] sm:$0xff]
    %v92 = vld [vmem:[#allocation6 + $0x88] sm:$0xff]
    %v93 = vld [vmem:[#allocation6 + $0x90] sm:$0xff]
    %v94 = vld [vmem:[#allocation6 + $0x98] sm:$0xff]
    %v95 = vld [vmem:[#allocation6 + $0xa0] sm:$0xff]
    %v96 = vld [vmem:[#allocation6 + $0xa8] sm:$0xff]
    %v97 = vld [vmem:[#allocation6 + $0xb0] sm:$0xff]
    %v98 = vld [vmem:[#allocation6 + $0xb8] sm:$0xff]
    %v99 = vld [vmem:[#allocation6 + $0xc0] sm:$0xff]
    %v100 = vld [vmem:[#allocation6 + $0xc8] sm:$0xff]
    %v101 = vld [vmem:[#allocation6 + $0xd0] sm:$0xff]
    %v102 = vld [vmem:[#allocation6 + $0xd8] sm:$0xff]
    %v103 = vld [vmem:[#allocation6 + $0xe0] sm:$0xff]
    %v104 = vld [vmem:[#allocation6 + $0xe8] sm:$0xff]
    %v105 = vld [vmem:[#allocation6 + $0xf0] sm:$0xff]
    %v106 = vld [vmem:[#allocation6 + $0xf8] sm:$0xff]
    %v107 = vld [vmem:[#allocation6 + $0x100] sm:$0xff]
    %v108 = vld [vmem:[#allocation6 + $0x108] sm:$0xff]
    %v109 = vld [vmem:[#allocation6 + $0x110] sm:$0xff]
    %v110 = vld [vmem:[#allocation6 + $0x118] sm:$0xff]
    %v111 = vld [vmem:[#allocation6 + $0x120] sm:$0xff]
    %v112 = vld [vmem:[#allocation6 + $0x128] sm:$0xff]
    %v113 = vld [vmem:[#allocation6 + $0x130] sm:$0xff]
    %v114 = vld [vmem:[#allocation6 + $0x138] sm:$0xff]
    %v115 = vld [vmem:[#allocation6 + $0x140] sm:$0xff]
    %v116 = vld [vmem:[#allocation6 + $0x148] sm:$0xff]
    %v117 = vld [vmem:[#allocation6 + $0x150] sm:$0xff]
    %v118 = vld [vmem:[#allocation6 + $0x158] sm:$0xff]
    %v119 = vld [vmem:[#allocation6 + $0x160] sm:$0xff]
    %v120 = vld [vmem:[#allocation6 + $0x168] sm:$0xff]
    %v121 = vld [vmem:[#allocation6 + $0x170] sm:$0xff]
    %v122 = vld [vmem:[#allocation6 + $0x178] sm:$0xff]
    %v123 = vld [vmem:[#allocation6 + $0x180] sm:$0xff]
    %v124 = vld [vmem:[#allocation6 + $0x188] sm:$0xff]
    %v125 = vld [vmem:[#allocation6 + $0x190] sm:$0xff]
    %v126 = vld [vmem:[#allocation6 + $0x198] sm:$0xff]
    %v127 = vld [vmem:[#allocation6 + $0x1a0] sm:$0xff]
    %v128 = vld [vmem:[#allocation6 + $0x1a8] sm:$0xff]
    %v129 = vld [vmem:[#allocation6 + $0x1b0] sm:$0xff]
    %v130 = vld [vmem:[#allocation6 + $0x1b8] sm:$0xff]
    %v131 = vld [vmem:[#allocation6 + $0x1c0] sm:$0xff]
    %v132 = vld [vmem:[#allocation6 + $0x1c8] sm:$0xff]
    %v133 = vld [vmem:[#allocation6 + $0x1d0] sm:$0xff]
    %v134 = vld [vmem:[#allocation6 + $0x1d8] sm:$0xff]
    %v135 = vld [vmem:[#allocation6 + $0x1e0] sm:$0xff]
    %v136 = vld [vmem:[#allocation6 + $0x1e8] sm:$0xff]
    %v137 = vld [vmem:[#allocation6 + $0x1f0] sm:$0xff]
    %v138 = vld [vmem:[#allocation6 + $0x1f8] sm:$0xff]
    %v139 = vld [vmem:[#allocation6 + $0x200] sm:$0xff]
    %v140 = vld [vmem:[#allocation6 + $0x208] sm:$0xff]
    %v141 = vld [vmem:[#allocation6 + $0x210] sm:$0xff]
    %v142 = vld [vmem:[#allocation6 + $0x218] sm:$0xff]
    %v143 = vld [vmem:[#allocation6 + $0x220] sm:$0xff]
    %v144 = vld [vmem:[#allocation6 + $0x228] sm:$0xff]
    %v145 = vld [vmem:[#allocation6 + $0x230] sm:$0xff]
    %v146 = vld [vmem:[#allocation6 + $0x238] sm:$0xff]
    %v147 = vld [vmem:[#allocation6 + $0x240] sm:$0xff]
    %v148 = vld [vmem:[#allocation6 + $0x248] sm:$0xff]
    %v149 = vld [vmem:[#allocation6 + $0x250] sm:$0xff]
    %v150 = vld [vmem:[#allocation6 + $0x258] sm:$0xff]
    %v151 = vld [vmem:[#allocation6 + $0x260] sm:$0xff]
    %v152 = vld [vmem:[#allocation6 + $0x268] sm:$0xff]
    %v153 = vld [vmem:[#allocation6 + $0x270] sm:$0xff]
    %v154 = vld [vmem:[#allocation6 + $0x278] sm:$0xff]
    %v155 = vld [vmem:[#allocation6 + $0x280] sm:$0xff]
    %v156 = vld [vmem:[#allocation6 + $0x288] sm:$0xff]
    %v157 = vld [vmem:[#allocation6 + $0x290] sm:$0xff]
    %v158 = vld [vmem:[#allocation6 + $0x298] sm:$0xff]
    %v159 = vld [vmem:[#allocation6 + $0x2a0] sm:$0xff]
    %v160 = vld [vmem:[#allocation6 + $0x2a8] sm:$0xff]
    %v161 = vld [vmem:[#allocation6 + $0x2b0] sm:$0xff]
    %v162 = vld [vmem:[#allocation6 + $0x2b8] sm:$0xff]
    %v163 = vld [vmem:[#allocation6 + $0x2c0] sm:$0xff]
    %v164 = vld [vmem:[#allocation6 + $0x2c8] sm:$0xff]
    %v165 = vld [vmem:[#allocation6 + $0x2d0] sm:$0xff]
    %v166 = vld [vmem:[#allocation6 + $0x2d8] sm:$0xff]
    %v167 = vld [vmem:[#allocation6 + $0x2e0] sm:$0xff]
    %v168 = vld [vmem:[#allocation6 + $0x2e8] sm:$0xff]
    %v169 = vld [vmem:[#allocation6 + $0x2f0] sm:$0xff]
    %v170 = vld [vmem:[#allocation6 + $0x2f8] sm:$0xff]
    %v171 = vld [vmem:[#allocation6 + $0x300] sm:$0xff]
    %v172 = vld [vmem:[#allocation6 + $0x308] sm:$0xff]
    %v173 = vld [vmem:[#allocation6 + $0x310] sm:$0xff]
    %v174 = vld [vmem:[#allocation6 + $0x318] sm:$0xff]
    %v175 = vld [vmem:[#allocation6 + $0x320] sm:$0xff]
    %v176 = vld [vmem:[#allocation6 + $0x328] sm:$0xff]
    %v177 = vld [vmem:[#allocation6 + $0x330] sm:$0xff]
    %v178 = vld [vmem:[#allocation6 + $0x338] sm:$0xff]
    %v179 = vld [vmem:[#allocation6 + $0x340] sm:$0xff]
    %v180 = vld [vmem:[#allocation6 + $0x348] sm:$0xff]
    %v181 = vld [vmem:[#allocation6 + $0x350] sm:$0xff]
    %v182 = vld [vmem:[#allocation6 + $0x358] sm:$0xff]
    %v183 = vld [vmem:[#allocation6 + $0x360] sm:$0xff]
    %v184 = vld [vmem:[#allocation6 + $0x368] sm:$0xff]
    %v185 = vld [vmem:[#allocation6 + $0x370] sm:$0xff]
    %v186 = vld [vmem:[#allocation6 + $0x378] sm:$0xff]
    %v187 = vld [vmem:[#allocation6 + $0x380] sm:$0xff]
    %v188 = vld [vmem:[#allocation6 + $0x388] sm:$0xff]
    %v189 = vld [vmem:[#allocation6 + $0x390] sm:$0xff]
    %v190 = vld [vmem:[#allocation6 + $0x398] sm:$0xff]
    %v191 = vld [vmem:[#allocation6 + $0x3a0] sm:$0xff]
    %v192 = vld [vmem:[#allocation6 + $0x3a8] sm:$0xff]
    %v193 = vld [vmem:[#allocation6 + $0x3b0] sm:$0xff]
    %v194 = vld [vmem:[#allocation6 + $0x3b8] sm:$0xff]
    %v195 = vld [vmem:[#allocation6 + $0x3c0] sm:$0xff]
    %v196 = vld [vmem:[#allocation6 + $0x3c8] sm:$0xff]
    %v197 = vld [vmem:[#allocation6 + $0x3d0] sm:$0xff]
    %v198 = vld [vmem:[#allocation6 + $0x3d8] sm:$0xff]
    %v199 = vld [vmem:[#allocation6 + $0x3e0] sm:$0xff]
    %v200 = vld [vmem:[#allocation6 + $0x3e8] sm:$0xff]
    %v201 = vld [vmem:[#allocation6 + $0x3f0] sm:$0xff]
    %v202 = vld [vmem:[#allocation6 + $0x3f8] sm:$0xff]
    %v203 = vld [vmem:[#allocation6 + $0x400] sm:$0xff]
    %v204 = vld [vmem:[#allocation6 + $0x408] sm:$0xff]
    %v205 = vld [vmem:[#allocation6 + $0x410] sm:$0xff]
    %v206 = vld [vmem:[#allocation6 + $0x418] sm:$0xff]
    %v207 = vld [vmem:[#allocation6 + $0x420] sm:$0xff]
    %v208 = vld [vmem:[#allocation6 + $0x428] sm:$0xff]
    %v209 = vld [vmem:[#allocation6 + $0x430] sm:$0xff]
    %v210 = vld [vmem:[#allocation6 + $0x438] sm:$0xff]
    %v211 = vld [vmem:[#allocation6 + $0x440] sm:$0xff]
    %v212 = vld [vmem:[#allocation6 + $0x448] sm:$0xff]
    %v213 = vld [vmem:[#allocation6 + $0x450] sm:$0xff]
    %v214 = vld [vmem:[#allocation6 + $0x458] sm:$0xff]
    %v215 = vld [vmem:[#allocation6 + $0x460] sm:$0xff]
    %v216 = vld [vmem:[#allocation6 + $0x468] sm:$0xff]
    %v217 = vld [vmem:[#allocation6 + $0x470] sm:$0xff]
    %v218 = vld [vmem:[#allocation6 + $0x478] sm:$0xff]
    %v219 = vld [vmem:[#allocation6 + $0x480] sm:$0xff]
    %v220 = vld [vmem:[#allocation6 + $0x488] sm:$0xff]
    %v221 = vld [vmem:[#allocation6 + $0x490] sm:$0xff]
    %v222 = vld [vmem:[#allocation6 + $0x498] sm:$0xff]
    %v223 = vld [vmem:[#allocation6 + $0x4a0] sm:$0xff]
    %v224 = vld [vmem:[#allocation6 + $0x4a8] sm:$0xff]
    %v225 = vld [vmem:[#allocation6 + $0x4b0] sm:$0xff]
    %v226 = vld [vmem:[#allocation6 + $0x4b8] sm:$0xff]
    %v227 = vld [vmem:[#allocation6 + $0x4c0] sm:$0xff]
    %v228 = vld [vmem:[#allocation6 + $0x4c8] sm:$0xff]
    %v229 = vld [vmem:[#allocation6 + $0x4d0] sm:$0xff]
    %v230 = vld [vmem:[#allocation6 + $0x4d8] sm:$0xff]
    %v231 = vld [vmem:[#allocation6 + $0x4e0] sm:$0xff]
    %v232 = vld [vmem:[#allocation6 + $0x4e8] sm:$0xff]
    %v233 = vld [vmem:[#allocation6 + $0x4f0] sm:$0xff]
    %v234 = vld [vmem:[#allocation6 + $0x4f8] sm:$0xff]
    %v235 = vld [vmem:[%s2] sm:$0x1]
    %v237 = vlaneseq
    %v238 = vshrl.u32 %v237, 7
    %v239 = vsub.s32 0, %v238
    %v240 = vrot.slane %v235, %v239
    %242 = vmatprep.subr.mxu0 0.0
    %243 = vmatpush1.msra.mxu0 %v75
    %244 = vmatprep.subr.mxu0 0.0
    %245 = vmatpush1.msra.mxu0 %v76
    %246 = vmatprep.subr.mxu0 0.0
    %247 = vmatpush1.msra.mxu0 %v77
    %248 = vmatprep.subr.mxu0 0.0
    %249 = vmatpush1.msra.mxu0 %v78
    %250 = vmatprep.subr.mxu0 0.0
    %251 = vmatpush1.msra.mxu0 %v79
    %252 = vmatprep.subr.mxu0 0.0
    %253 = vmatpush1.msra.mxu0 %v80
    %254 = vmatprep.subr.mxu0 0.0
    %255 = vmatpush1.msra.mxu0 %v81
    %256 = vmatprep.subr.mxu0 0.0
    %257 = vmatpush1.msra.mxu0 %v82
    %258 = vmatprep.subr.mxu0 0.0
    %259 = vmatpush1.msra.mxu0 %v83
    %260 = vmatprep.subr.mxu0 0.0
    %261 = vmatpush1.msra.mxu0 %v84
    %262 = vmatprep.subr.mxu0 0.0
    %263 = vmatpush1.msra.mxu0 %v85
    %264 = vmatprep.subr.mxu0 0.0
    %265 = vmatpush1.msra.mxu0 %v86
    %266 = vmatprep.subr.mxu0 0.0
    %267 = vmatpush1.msra.mxu0 %v87
    %268 = vmatprep.subr.mxu0 0.0
    %269 = vmatpush1.msra.mxu0 %v88
    %270 = vmatprep.subr.mxu0 0.0
    %271 = vmatpush1.msra.mxu0 %v89
    %272 = vmatprep.subr.mxu0 0.0
    %273 = vmatpush1.msra.mxu0 %v90
    %274 = vmatprep.subr.mxu0 0.0
    %275 = vmatpush1.msra.mxu0 %v91
    %276 = vmatprep.subr.mxu0 0.0
    %277 = vmatpush1.msra.mxu0 %v92
    %278 = vmatprep.subr.mxu0 0.0
    %279 = vmatpush1.msra.mxu0 %v93
    %280 = vmatprep.subr.mxu0 0.0
    %281 = vmatpush1.msra.mxu0 %v94
    %282 = vmatprep.subr.mxu0 0.0
    %283 = vmatpush1.msra.mxu0 %v95
    %284 = vmatprep.subr.mxu0 0.0
    %285 = vmatpush1.msra.mxu0 %v96
    %286 = vmatprep.subr.mxu0 0.0
    %287 = vmatpush1.msra.mxu0 %v97
    %288 = vmatprep.subr.mxu0 0.0
    %289 = vmatpush1.msra.mxu0 %v98
    %290 = vmatprep.subr.mxu0 0.0
    %291 = vmatpush1.msra.mxu0 %v99
    %292 = vmatprep.subr.mxu0 0.0
    %293 = vmatpush1.msra.mxu0 %v100
    %294 = vmatprep.subr.mxu0 0.0
    %295 = vmatpush1.msra.mxu0 %v101
    %296 = vmatprep.subr.mxu0 0.0
    %297 = vmatpush1.msra.mxu0 %v102
    %298 = vmatprep.subr.mxu0 0.0
    %299 = vmatpush1.msra.mxu0 %v103
    %300 = vmatprep.subr.mxu0 0.0
    %301 = vmatpush1.msra.mxu0 %v104
    %302 = vmatprep.subr.mxu0 0.0
    %303 = vmatpush1.msra.mxu0 %v105
    %304 = vmatprep.subr.mxu0 0.0
    %305 = vmatpush1.msra.mxu0 %v106
    %306 = vmatprep.mubr.f32.mxu0 %v66
    %307 = vmatmul.mubr.f32.gmra.mrb[0].mxu0 %v65
    %v308 = vpop.f32.mrb[0].mxu0
    %v309 = vadd.f32 %v240, %v308
    %v310 = vpop.f32.mrb[0].mxu0
    %311 = vdwg.mxu0
    %312 = vmatprep.subr.mxu0 0.0
    %313 = vmatpush1.msra.mxu0 %v107
    %314 = vmatprep.subr.mxu0 0.0
    %315 = vmatpush1.msra.mxu0 %v108
    %316 = vmatprep.subr.mxu0 0.0
    %317 = vmatpush1.msra.mxu0 %v109
    %318 = vmatprep.subr.mxu0 0.0
    %319 = vmatpush1.msra.mxu0 %v110
    %320 = vmatprep.subr.mxu0 0.0
    %321 = vmatpush1.msra.mxu0 %v111
    %322 = vmatprep.subr.mxu0 0.0
    %323 = vmatpush1.msra.mxu0 %v112
    %324 = vmatprep.subr.mxu0 0.0
    %325 = vmatpush1.msra.mxu0 %v113
    %326 = vmatprep.subr.mxu0 0.0
    %327 = vmatpush1.msra.mxu0 %v114
    %328 = vmatprep.subr.mxu0 0.0
    %329 = vmatpush1.msra.mxu0 %v115
    %330 = vmatprep.subr.mxu0 0.0
    %331 = vmatpush1.msra.mxu0 %v116
    %332 = vmatprep.subr.mxu0 0.0
    %333 = vmatpush1.msra.mxu0 %v117
    %334 = vmatprep.subr.mxu0 0.0
    %335 = vmatpush1.msra.mxu0 %v118
    %336 = vmatprep.subr.mxu0 0.0
    %337 = vmatpush1.msra.mxu0 %v119
    %338 = vmatprep.subr.mxu0 0.0
    %339 = vmatpush1.msra.mxu0 %v120
    %340 = vmatprep.subr.mxu0 0.0
    %341 = vmatpush1.msra.mxu0 %v121
    %342 = vmatprep.subr.mxu0 0.0
    %343 = vmatpush1.msra.mxu0 %v122
    %344 = vmatprep.subr.mxu0 0.0
    %345 = vmatpush1.msra.mxu0 %v123
    %346 = vmatprep.subr.mxu0 0.0
    %347 = vmatpush1.msra.mxu0 %v124
    %348 = vmatprep.subr.mxu0 0.0
    %349 = vmatpush1.msra.mxu0 %v125
    %350 = vmatprep.subr.mxu0 0.0
    %351 = vmatpush1.msra.mxu0 %v126
    %352 = vmatprep.subr.mxu0 0.0
    %353 = vmatpush1.msra.mxu0 %v127
    %354 = vmatprep.subr.mxu0 0.0
    %355 = vmatpush1.msra.mxu0 %v128
    %356 = vmatprep.subr.mxu0 0.0
    %357 = vmatpush1.msra.mxu0 %v129
    %358 = vmatprep.subr.mxu0 0.0
    %359 = vmatpush1.msra.mxu0 %v130
    %360 = vmatprep.subr.mxu0 0.0
    %361 = vmatpush1.msra.mxu0 %v131
    %362 = vmatprep.subr.mxu0 0.0
    %363 = vmatpush1.msra.mxu0 %v132
    %364 = vmatprep.subr.mxu0 0.0
    %365 = vmatpush1.msra.mxu0 %v133
    %366 = vmatprep.subr.mxu0 0.0
    %367 = vmatpush1.msra.mxu0 %v134
    %368 = vmatprep.subr.mxu0 0.0
    %369 = vmatpush1.msra.mxu0 %v135
    %370 = vmatprep.subr.mxu0 0.0
    %371 = vmatpush1.msra.mxu0 %v136
    %372 = vmatprep.subr.mxu0 0.0
    %373 = vmatpush1.msra.mxu0 %v137
    %374 = vmatprep.subr.mxu0 0.0
    %375 = vmatpush1.msra.mxu0 %v138
    %376 = vmatprep.mubr.f32.mxu0 %v68
    %377 = vmatmul.mubr.f32.gmra.mrb[0].mxu0 %v67
    %v378 = vpop.f32.mrb[0].mxu0
    %v379 = vadd.f32 %v309, %v378
    %v380 = vpop.f32.mrb[0].mxu0
    %381 = vdwg.mxu0
    %382 = vmatprep.subr.mxu0 0.0
    %383 = vmatpush1.msra.mxu0 %v139
    %384 = vmatprep.subr.mxu0 0.0
    %385 = vmatpush1.msra.mxu0 %v140
    %386 = vmatprep.subr.mxu0 0.0
    %387 = vmatpush1.msra.mxu0 %v141
    %388 = vmatprep.subr.mxu0 0.0
    %389 = vmatpush1.msra.mxu0 %v142
    %390 = vmatprep.subr.mxu0 0.0
    %391 = vmatpush1.msra.mxu0 %v143
    %392 = vmatprep.subr.mxu0 0.0
    %393 = vmatpush1.msra.mxu0 %v144
    %394 = vmatprep.subr.mxu0 0.0
    %395 = vmatpush1.msra.mxu0 %v145
    %396 = vmatprep.subr.mxu0 0.0
    %397 = vmatpush1.msra.mxu0 %v146
    %398 = vmatprep.subr.mxu0 0.0
    %399 = vmatpush1.msra.mxu0 %v147
    %400 = vmatprep.subr.mxu0 0.0
    %401 = vmatpush1.msra.mxu0 %v148
    %402 = vmatprep.subr.mxu0 0.0
    %403 = vmatpush1.msra.mxu0 %v149
    %404 = vmatprep.subr.mxu0 0.0
    %405 = vmatpush1.msra.mxu0 %v150
    %406 = vmatprep.subr.mxu0 0.0
    %407 = vmatpush1.msra.mxu0 %v151
    %408 = vmatprep.subr.mxu0 0.0
    %409 = vmatpush1.msra.mxu0 %v152
    %410 = vmatprep.subr.mxu0 0.0
    %411 = vmatpush1.msra.mxu0 %v153
    %412 = vmatprep.subr.mxu0 0.0
    %413 = vmatpush1.msra.mxu0 %v154
    %414 = vmatprep.subr.mxu0 0.0
    %415 = vmatpush1.msra.mxu0 %v155
    %416 = vmatprep.subr.mxu0 0.0
    %417 = vmatpush1.msra.mxu0 %v156
    %418 = vmatprep.subr.mxu0 0.0
    %419 = vmatpush1.msra.mxu0 %v157
    %420 = vmatprep.subr.mxu0 0.0
    %421 = vmatpush1.msra.mxu0 %v158
    %422 = vmatprep.subr.mxu0 0.0
    %423 = vmatpush1.msra.mxu0 %v159
    %424 = vmatprep.subr.mxu0 0.0
    %425 = vmatpush1.msra.mxu0 %v160
    %426 = vmatprep.subr.mxu0 0.0
    %427 = vmatpush1.msra.mxu0 %v161
    %428 = vmatprep.subr.mxu0 0.0
    %429 = vmatpush1.msra.mxu0 %v162
    %430 = vmatprep.subr.mxu0 0.0
    %431 = vmatpush1.msra.mxu0 %v163
    %432 = vmatprep.subr.mxu0 0.0
    %433 = vmatpush1.msra.mxu0 %v164
    %434 = vmatprep.subr.mxu0 0.0
    %435 = vmatpush1.msra.mxu0 %v165
    %436 = vmatprep.subr.mxu0 0.0
    %437 = vmatpush1.msra.mxu0 %v166
    %438 = vmatprep.subr.mxu0 0.0
    %439 = vmatpush1.msra.mxu0 %v167
    %440 = vmatprep.subr.mxu0 0.0
    %441 = vmatpush1.msra.mxu0 %v168
    %442 = vmatprep.subr.mxu0 0.0
    %443 = vmatpush1.msra.mxu0 %v169
    %444 = vmatprep.subr.mxu0 0.0
    %445 = vmatpush1.msra.mxu0 %v170
    %446 = vmatprep.mubr.f32.mxu0 %v70
    %447 = vmatmul.mubr.f32.gmra.mrb[0].mxu0 %v69
    %v448 = vpop.f32.mrb[0].mxu0
    %v449 = vadd.f32 %v379, %v448
    %v450 = vpop.f32.mrb[0].mxu0
    %451 = vdwg.mxu0
    %452 = vmatprep.subr.mxu0 0.0
    %453 = vmatpush1.msra.mxu0 %v171
    %454 = vmatprep.subr.mxu0 0.0
    %455 = vmatpush1.msra.mxu0 %v172
    %456 = vmatprep.subr.mxu0 0.0
    %457 = vmatpush1.msra.mxu0 %v173
    %458 = vmatprep.subr.mxu0 0.0
    %459 = vmatpush1.msra.mxu0 %v174
    %460 = vmatprep.subr.mxu0 0.0
    %461 = vmatpush1.msra.mxu0 %v175
    %462 = vmatprep.subr.mxu0 0.0
    %463 = vmatpush1.msra.mxu0 %v176
    %464 = vmatprep.subr.mxu0 0.0
    %465 = vmatpush1.msra.mxu0 %v177
    %466 = vmatprep.subr.mxu0 0.0
    %467 = vmatpush1.msra.mxu0 %v178
    %468 = vmatprep.subr.mxu0 0.0
    %469 = vmatpush1.msra.mxu0 %v179
    %470 = vmatprep.subr.mxu0 0.0
    %471 = vmatpush1.msra.mxu0 %v180
    %472 = vmatprep.subr.mxu0 0.0
    %473 = vmatpush1.msra.mxu0 %v181
    %474 = vmatprep.subr.mxu0 0.0
    %475 = vmatpush1.msra.mxu0 %v182
    %476 = vmatprep.subr.mxu0 0.0
    %477 = vmatpush1.msra.mxu0 %v183
    %478 = vmatprep.subr.mxu0 0.0
    %479 = vmatpush1.msra.mxu0 %v184
    %480 = vmatprep.subr.mxu0 0.0
    %481 = vmatpush1.msra.mxu0 %v185
    %482 = vmatprep.subr.mxu0 0.0
    %483 = vmatpush1.msra.mxu0 %v186
    %484 = vmatprep.subr.mxu0 0.0
    %485 = vmatpush1.msra.mxu0 %v187
    %486 = vmatprep.subr.mxu0 0.0
    %487 = vmatpush1.msra.mxu0 %v188
    %488 = vmatprep.subr.mxu0 0.0
    %489 = vmatpush1.msra.mxu0 %v189
    %490 = vmatprep.subr.mxu0 0.0
    %491 = vmatpush1.msra.mxu0 %v190
    %492 = vmatprep.subr.mxu0 0.0
    %493 = vmatpush1.msra.mxu0 %v191
    %494 = vmatprep.subr.mxu0 0.0
    %495 = vmatpush1.msra.mxu0 %v192
    %496 = vmatprep.subr.mxu0 0.0
    %497 = vmatpush1.msra.mxu0 %v193
    %498 = vmatprep.subr.mxu0 0.0
    %499 = vmatpush1.msra.mxu0 %v194
    %500 = vmatprep.subr.mxu0 0.0
    %501 = vmatpush1.msra.mxu0 %v195
    %502 = vmatprep.subr.mxu0 0.0
    %503 = vmatpush1.msra.mxu0 %v196
    %504 = vmatprep.subr.mxu0 0.0
    %505 = vmatpush1.msra.mxu0 %v197
    %506 = vmatprep.subr.mxu0 0.0
    %507 = vmatpush1.msra.mxu0 %v198
    %508 = vmatprep.subr.mxu0 0.0
    %509 = vmatpush1.msra.mxu0 %v199
    %510 = vmatprep.subr.mxu0 0.0
    %511 = vmatpush1.msra.mxu0 %v200
    %512 = vmatprep.subr.mxu0 0.0
    %513 = vmatpush1.msra.mxu0 %v201
    %514 = vmatprep.subr.mxu0 0.0
    %515 = vmatpush1.msra.mxu0 %v202
    %516 = vmatprep.mubr.f32.mxu0 %v72
    %517 = vmatmul.mubr.f32.gmra.mrb[0].mxu0 %v71
    %v518 = vpop.f32.mrb[0].mxu0
    %v519 = vadd.f32 %v449, %v518
    %v520 = vpop.f32.mrb[0].mxu0
    %521 = vdwg.mxu0
    %522 = vmatprep.subr.mxu0 0.0
    %523 = vmatpush1.msra.mxu0 %v203
    %524 = vmatprep.subr.mxu0 0.0
    %525 = vmatpush1.msra.mxu0 %v204
    %526 = vmatprep.subr.mxu0 0.0
    %527 = vmatpush1.msra.mxu0 %v205
    %528 = vmatprep.subr.mxu0 0.0
    %529 = vmatpush1.msra.mxu0 %v206
    %530 = vmatprep.subr.mxu0 0.0
    %531 = vmatpush1.msra.mxu0 %v207
    %532 = vmatprep.subr.mxu0 0.0
    %533 = vmatpush1.msra.mxu0 %v208
    %534 = vmatprep.subr.mxu0 0.0
    %535 = vmatpush1.msra.mxu0 %v209
    %536 = vmatprep.subr.mxu0 0.0
    %537 = vmatpush1.msra.mxu0 %v210
    %538 = vmatprep.subr.mxu0 0.0
    %539 = vmatpush1.msra.mxu0 %v211
    %540 = vmatprep.subr.mxu0 0.0
    %541 = vmatpush1.msra.mxu0 %v212
    %542 = vmatprep.subr.mxu0 0.0
    %543 = vmatpush1.msra.mxu0 %v213
    %544 = vmatprep.subr.mxu0 0.0
    %545 = vmatpush1.msra.mxu0 %v214
    %546 = vmatprep.subr.mxu0 0.0
    %547 = vmatpush1.msra.mxu0 %v215
    %548 = vmatprep.subr.mxu0 0.0
    %549 = vmatpush1.msra.mxu0 %v216
    %550 = vmatprep.subr.mxu0 0.0
    %551 = vmatpush1.msra.mxu0 %v217
    %552 = vmatprep.subr.mxu0 0.0
    %553 = vmatpush1.msra.mxu0 %v218
    %554 = vmatprep.subr.mxu0 0.0
    %555 = vmatpush1.msra.mxu0 %v219
    %556 = vmatprep.subr.mxu0 0.0
    %557 = vmatpush1.msra.mxu0 %v220
    %558 = vmatprep.subr.mxu0 0.0
    %559 = vmatpush1.msra.mxu0 %v221
    %560 = vmatprep.subr.mxu0 0.0
    %561 = vmatpush1.msra.mxu0 %v222
    %562 = vmatprep.subr.mxu0 0.0
    %563 = vmatpush1.msra.mxu0 %v223
    %564 = vmatprep.subr.mxu0 0.0
    %565 = vmatpush1.msra.mxu0 %v224
    %566 = vmatprep.subr.mxu0 0.0
    %567 = vmatpush1.msra.mxu0 %v225
    %568 = vmatprep.subr.mxu0 0.0
    %569 = vmatpush1.msra.mxu0 %v226
    %570 = vmatprep.subr.mxu0 0.0
    %571 = vmatpush1.msra.mxu0 %v227
    %572 = vmatprep.subr.mxu0 0.0
    %573 = vmatpush1.msra.mxu0 %v228
    %574 = vmatprep.subr.mxu0 0.0
    %575 = vmatpush1.msra.mxu0 %v229
    %576 = vmatprep.subr.mxu0 0.0
    %577 = vmatpush1.msra.mxu0 %v230
    %578 = vmatprep.subr.mxu0 0.0
    %579 = vmatpush1.msra.mxu0 %v231
    %580 = vmatprep.subr.mxu0 0.0
    %581 = vmatpush1.msra.mxu0 %v232
    %582 = vmatprep.subr.mxu0 0.0
    %583 = vmatpush1.msra.mxu0 %v233
    %584 = vmatprep.subr.mxu0 0.0
    %585 = vmatpush1.msra.mxu0 %v234
    %586 = vmatprep.mubr.f32.mxu0 %v74
    %587 = vmatmul.mubr.f32.gmra.mrb[0].mxu0 %v73
    %v588 = vpop.f32.mrb[0].mxu0
    %v589 = vadd.f32 %v519, %v588
    %v590 = vpop.f32.mrb[0].mxu0
    %591 = vdwg.mxu0
    %v592 = vmax.f32 %v589, 0.0
    %v593 = vld [vmem:[#allocation2] sm:$0xff]
    %v594 = vld [vmem:[#allocation8] sm:$0xff]
    %v595 = vld [vmem:[#allocation8 + $0x8] sm:$0xff]
    %v596 = vld [vmem:[#allocation8 + $0x10] sm:$0xff]
    %v597 = vld [vmem:[#allocation8 + $0x18] sm:$0xff]
    %v598 = vld [vmem:[#allocation8 + $0x20] sm:$0xff]
    %v599 = vld [vmem:[#allocation8 + $0x28] sm:$0xff]
    %v600 = vld [vmem:[#allocation8 + $0x30] sm:$0xff]
    %v601 = vld [vmem:[#allocation8 + $0x38] sm:$0xff]
    %v602 = vld [vmem:[#allocation8 + $0x40] sm:$0xff]
    %v603 = vld [vmem:[#allocation8 + $0x48] sm:$0xff]
    %v604 = vld [vmem:[#allocation8 + $0x50] sm:$0xff]
    %v605 = vld [vmem:[#allocation8 + $0x58] sm:$0xff]
    %v606 = vld [vmem:[#allocation8 + $0x60] sm:$0xff]
    %v607 = vld [vmem:[#allocation8 + $0x68] sm:$0xff]
    %v608 = vld [vmem:[#allocation8 + $0x70] sm:$0xff]
    %v609 = vld [vmem:[#allocation8 + $0x78] sm:$0xff]
    %610 = vmatprep.subr.mxu0 0.0
    %611 = vmatpush1.msra.mxu0 %v594
    %612 = vmatprep.subr.mxu0 0.0
    %613 = vmatpush1.msra.mxu0 %v595
    %614 = vmatprep.subr.mxu0 0.0
    %615 = vmatpush1.msra.mxu0 %v596
    %616 = vmatprep.subr.mxu0 0.0
    %617 = vmatpush1.msra.mxu0 %v597
    %618 = vmatprep.subr.mxu0 0.0
    %619 = vmatpush1.msra.mxu0 %v598
    %620 = vmatprep.subr.mxu0 0.0
    %621 = vmatpush1.msra.mxu0 %v599
    %622 = vmatprep.subr.mxu0 0.0
    %623 = vmatpush1.msra.mxu0 %v600
    %624 = vmatprep.subr.mxu0 0.0
    %625 = vmatpush1.msra.mxu0 %v601
    %626 = vmatprep.subr.mxu0 0.0
    %627 = vmatpush1.msra.mxu0 %v602
    %628 = vmatprep.subr.mxu0 0.0
    %629 = vmatpush1.msra.mxu0 %v603
    %630 = vmatprep.subr.mxu0 0.0
    %631 = vmatpush1.msra.mxu0 %v604
    %632 = vmatprep.subr.mxu0 0.0
    %633 = vmatpush1.msra.mxu0 %v605
    %634 = vmatprep.subr.mxu0 0.0
    %635 = vmatpush1.msra.mxu0 %v606
    %636 = vmatprep.subr.mxu0 0.0
    %637 = vmatpush1.msra.mxu0 %v607
    %638 = vmatprep.subr.mxu0 0.0
    %639 = vmatpush1.msra.mxu0 %v608
    %640 = vmatprep.subr.mxu0 0.0
    %641 = vmatpush1.msra.mxu0 %v609
    %642 = vmatprep.subr.mxu0 0.0
    %643 = vmatpush1.msra.mxu0 0.0
    %644 = vmatprep.subr.mxu0 0.0
    %645 = vmatpush1.msra.mxu0 0.0
    %646 = vmatprep.subr.mxu0 0.0
    %647 = vmatpush1.msra.mxu0 0.0
    %648 = vmatprep.subr.mxu0 0.0
    %649 = vmatpush1.msra.mxu0 0.0
    %650 = vmatprep.subr.mxu0 0.0
    %651 = vmatpush1.msra.mxu0 0.0
    %652 = vmatprep.subr.mxu0 0.0
    %653 = vmatpush1.msra.mxu0 0.0
    %654 = vmatprep.subr.mxu0 0.0
    %655 = vmatpush1.msra.mxu0 0.0
    %656 = vmatprep.subr.mxu0 0.0
    %657 = vmatpush1.msra.mxu0 0.0
    %658 = vmatprep.subr.mxu0 0.0
    %659 = vmatpush1.msra.mxu0 0.0
    %660 = vmatprep.subr.mxu0 0.0
    %661 = vmatpush1.msra.mxu0 0.0
    %662 = vmatprep.subr.mxu0 0.0
    %663 = vmatpush1.msra.mxu0 0.0
    %664 = vmatprep.subr.mxu0 0.0
    %665 = vmatpush1.msra.mxu0 0.0
    %666 = vmatprep.subr.mxu0 0.0
    %667 = vmatpush1.msra.mxu0 0.0
    %668 = vmatprep.subr.mxu0 0.0
    %669 = vmatpush1.msra.mxu0 0.0
    %670 = vmatprep.subr.mxu0 0.0
    %671 = vmatpush1.msra.mxu0 0.0
    %672 = vmatprep.subr.mxu0 0.0
    %673 = vmatpush1.msra.mxu0 0.0
    %674 = vmatprep.mubr.f32.mxu0 0.0
    %675 = vmatmul.mubr.f32.gmra.mrb[0].mxu0 %v592
    %v676 = vpop.f32.mrb[0].mxu0
    %v677 = vadd.f32 0.0, %v676
    %v678 = vpop.f32.mrb[0].mxu0
    %679 = vdwg.mxu0
    %v680 = vadd.f32 %v593, %v677
    %681 = vst [vmem:[#allocation2] sm:$0xff] %v680
    // Predicated region
    $region38: #{tpu_custom_call.1} parent=1 // pred_check
      %p682 = pneg %p60
    $region39: #{tpu_custom_call.1} parent=1 // pred_check_branch
      %684 = sbr.rel (%p682) target = $region41
    $region40: #{tpu_custom_call.1} parent=1 // pred_region
      %v685 = vld [vmem:[#allocation2] sm:$0xff]
      %v686 = vld [vmem:[%s4] sm:$0x1]
      %v688 = vlaneseq
      %v689 = vshrl.u32 %v688, 7
      %v690 = vsub.s32 0, %v689
      %v691 = vrot.slane %v686, %v690
      %v693 = vadd.f32 %v685, %v691
      %694 = vst [vmem:[#allocation9] sm:$0xff] %v693
    $region41: #{tpu_custom_call.1} parent=1 // pred_fallthru
      _
    // Predicated region
    $region42: #{tpu_custom_call.1} parent=1 // pred_check
      _
    $region43: #{tpu_custom_call.1} parent=1 // pred_check_branch
      %696 = sbr.rel (0) target = $region45
    $region44: #{tpu_custom_call.1} parent=1 // pred_region
      %s698 = ssub.s32 128, 128
      %699 = vsyncadd [#allocation5], %s698
      %s701 = sshll.u32 [#allocation9], 4
      %s702 = int_to_ptr.vmem [resolvable:$true] %s701
      %704 = dma.vmem_to_hbm [thread:$0]  %s702, 128, %s5, [#allocation5]
    $region45: #{tpu_custom_call.1} parent=1 // pred_fallthru
      _
    // Predicated region
    $region46: #{tpu_custom_call.1} parent=1 // pred_check
      _
    $region47: #{tpu_custom_call.1} parent=1 // pred_check_branch
      %706 = sbr.rel (0) target = $region49
    $region48: #{tpu_custom_call.1} parent=1 // pred_region
      %707 = dma.done [#allocation5], 128
    $region49: #{tpu_custom_call.1} parent=1 // pred_fallthru
      _
    %708 = vsyncpa [#allocation4], 1
    %709 = vsyncpa [#allocation7], 1
    %710 = vsyncpa [#allocation5], 1

</llo_original>
